<compile_context>
chip_gen: v6e
topology: v6e:2x2x1
jax: 0.10.0
libtpu: 0.0.40
codegen_flags: <defaults>
</compile_context>

<pallas_src>
import math
from functools import partial

import jax
import jax.numpy as jnp
from jax.experimental import pallas as pl
from jax.experimental.pallas import tpu as pltpu


def _ste_kernel(xbig_ref, wbig_ref, out_ref):
    # xbig_ref : (tile_rows, k_big)   fused [x(t-1), x(t), x(t+1), x_mark, onehot(state)]
    # wbig_ref : (k_big, d_model)     fused [conv taps ; temporal linear ; emb table]
    # out_ref  : (tile_rows, d_model)
    out_ref[...] = jnp.dot(
        xbig_ref[...], wbig_ref[...], preferred_element_type=jnp.float32
    ).astype(out_ref.dtype)


def _pick_tile(rows, k_big, d_model):
    """Static (trace-time) row-tile selection."""
    k_pad = -(-k_big // 128) * 128
    d_pad = -(-d_model // 128) * 128
    # f32 bytes per row in VMEM: out double-buffer + acc temp + input double-buffer.
    bytes_per_row = 4 * (2 * d_pad + d_pad + 2 * k_pad)
    vmem_budget = 24 << 20  # conservative: fits v5e/v6e/v7x scoped limits we request
    cap = max(8, vmem_budget // bytes_per_row)

    tile = min(2048, cap, rows)
    if rows >= 16:
        # Guarantee >= 2 grid steps so v7x can shard rows across both TensorCores.
        tile = min(tile, 8 * pl.cdiv(rows, 16))
    if tile >= 8:
        tile = (tile // 8) * 8  # keep multiple of 8 (sublane rule)
    return max(tile, 1)


@partial(jax.jit, static_argnames=("out_dtype",))
def state_time_embedding(
    x_state, x, x_mark, w_conv, w_lin, emb_table, *, out_dtype=jnp.float32
):
    """Forward pass of StateTimeEmbedding_wo_pos.

    x_state  : (B, L, 1)  int32 group indices
    x        : (B, L, c_in)  float32 values
    x_mark   : (B, L, d_inp) float32 time features
    w_conv   : (d_model, c_in, 3)  PyTorch Conv1d weight (circular, no bias)
    w_lin    : (d_model, d_inp)    PyTorch Linear weight (no bias)
    emb_table: (num_grps, d_model) nn.Embedding weight
    out_dtype: output dtype (use jnp.bfloat16 downstream to halve HBM writeback)
    returns  : (B, L, d_model)
    """
    B, L, c_in = x.shape
    d_inp = x_mark.shape[-1]
    d_model = w_conv.shape[0]
    num_grps = emb_table.shape[0]
    rows = B * L
    k_big = 3 * c_in + d_inp + num_grps

    # --- wrapper-side fusion (layout plumbing only) ---------------------------
    # Circular Conv1d(k=3, pad=1): out[t] = sum_k W[:,:,k] @ x[(t-1+k) mod L]
    # tap 0 -> roll +1, tap 1 -> no roll, tap 2 -> roll -1 (per batch, along L).
    onehot = (
        x_state.astype(jnp.int32) == jnp.arange(num_grps, dtype=jnp.int32)
    ).astype(jnp.float32)  # (B, L, num_grps)
    xbig = jnp.concatenate(
        [jnp.roll(x, 1, axis=1), x, jnp.roll(x, -1, axis=1), x_mark, onehot],
        axis=-1,
    ).reshape(rows, k_big)

    wbig = jnp.concatenate(
        [w_conv[:, :, 0].T, w_conv[:, :, 1].T, w_conv[:, :, 2].T, w_lin.T, emb_table],
        axis=0,
    ).astype(jnp.float32)  # (k_big, d_model)

    # --- tiling: large lane-dense row tiles over the flattened (B*L) volume ---
    tile = _pick_tile(rows, k_big, d_model)
    grid = (pl.cdiv(rows, tile),)

    out = pl.pallas_call(
        _ste_kernel,
        out_shape=jax.ShapeDtypeStruct((rows, d_model), out_dtype),
        grid_spec=pltpu.PrefetchScalarGridSpec(
            num_scalar_prefetch=0,
            grid=grid,
            in_specs=[
                pl.BlockSpec((tile, k_big), lambda i: (i, 0)),
                pl.BlockSpec((k_big, d_model), lambda i: (0, 0)),
            ],
            out_specs=pl.BlockSpec((tile, d_model), lambda i: (i, 0)),
        ),
        compiler_params=pltpu.CompilerParams(
            dimension_semantics=("parallel",),
            vmem_limit_bytes=48 << 20,
        ),
    )(xbig, wbig)

    return out.reshape(B, L, d_model)


def reference_state_time_embedding(x_state, x, x_mark, w_conv, w_lin, emb_table):
    """Pure-JAX reference for checking the kernel."""
    out = jnp.zeros((x.shape[0], x.shape[1], w_conv.shape[0]), dtype=jnp.float32)
    for k in range(3):
        xs = jnp.roll(x, 1 - k, axis=1)
        out = out + jnp.einsum("blc,dc->bld", xs, w_conv[:, :, k])
    out = out + jnp.einsum("bli,di->bld", x_mark, w_lin)
    out = out + emb_table[x_state[..., 0]]
    return out


if __name__ == "__main__":
    # Small shapes consistent with StateTimeEmbedding_wo_pos(c_in, num_grps, d_model, freq='h').
    # d_model chosen as a multiple of 128 so output stores are lane-dense.
    B, L, c_in, d_model = 2, 8, 4, 128
    num_grps = 6
    d_inp = 4  # freq_map['h']

    key = jax.random.PRNGKey(0)
    k_x, k_mark, k_state, k_conv, k_lin, k_emb = jax.random.split(key, 6)

    x = jax.random.normal(k_x, (B, L, c_in), dtype=jnp.float32)
    x_mark = jax.random.normal(k_mark, (B, L, d_inp), dtype=jnp.float32)
    x_state = jax.random.randint(k_state, (B, L, 1), 0, num_grps, dtype=jnp.int32)

    # Conv1d weight, PyTorch layout (d_model, c_in, 3), kaiming_normal fan_in / leaky_relu.
    fan_in = c_in * 3
    gain = math.sqrt(2.0 / (1.0 + 0.01 ** 2))
    std = gain / math.sqrt(fan_in)
    w_conv = std * jax.random.normal(k_conv, (d_model, c_in, 3), dtype=jnp.float32)

    # Linear weight, PyTorch layout (d_model, d_inp), default uniform init.
    bound = 1.0 / math.sqrt(d_inp)
    w_lin = jax.random.uniform(
        k_lin, (d_model, d_inp), minval=-bound, maxval=bound, dtype=jnp.float32
    )

    # Embedding table, PyTorch default N(0, 1).
    emb_table = jax.random.normal(k_emb, (num_grps, d_model), dtype=jnp.float32)

    out = state_time_embedding(x_state, x, x_mark, w_conv, w_lin, emb_table)
    out = jax.block_until_ready(out)

    ref = reference_state_time_embedding(x_state, x, x_mark, w_conv, w_lin, emb_table)
    assert out.shape == (B, L, d_model)
    assert jnp.allclose(out, ref, atol=1e-4, rtol=1e-4)

    print("KERNEL_OK")
</pallas_src>

<mosaic_0001>
module attributes {stable_mosaic.version = 11 : i64} {
  func.func @_ste_kernel(%arg0: i32, %arg1: memref<8x22xf32, #tpu.memory_space<vmem>>, %arg2: memref<22x128xf32, #tpu.memory_space<vmem>>, %arg3: memref<8x128xf32, #tpu.memory_space<vmem>>) attributes {dimension_semantics = [#tpu.dimension_semantics<parallel>], iteration_bounds = array<i64: 2>, scalar_prefetch = 0 : i64, scratch_operands = 0 : i64, tpu.core_type = #tpu.core_type<tc>, window_params = [{transform_indices = @transform_0, window_bounds = array<i64: 8, 22>}, {pipeline_mode = #tpu.pipeline_mode<synchronous>, transform_indices = @transform_1, window_bounds = array<i64: 22, 128>}, {transform_indices = @transform_2, window_bounds = array<i64: 8, 128>}]} {
    %c0 = arith.constant 0 : index
    %c0_0 = arith.constant 0 : index
    %0 = vector.load %arg1[%c0, %c0_0] : memref<8x22xf32, #tpu.memory_space<vmem>>, vector<8x22xf32>
    %c0_1 = arith.constant 0 : index
    %c0_2 = arith.constant 0 : index
    %1 = vector.load %arg2[%c0_1, %c0_2] : memref<22x128xf32, #tpu.memory_space<vmem>>, vector<22x128xf32>
    %cst = arith.constant dense<0.000000e+00> : vector<8x128xf32>
    %2 = tpu.matmul %0, %1, %cst {dimension_numbers = #tpu.dot_dimension_numbers<[1], [0], [0], [1], [0, 0, 1, 1], [], []>} : vector<8x22xf32>, vector<22x128xf32>, vector<8x128xf32> -> vector<8x128xf32>
    %c0_3 = arith.constant 0 : index
    %c0_4 = arith.constant 0 : index
    %3 = vector.load %arg3[%c0_3, %c0_4] : memref<8x128xf32, #tpu.memory_space<vmem>>, vector<8x128xf32>
    tpu.vector_store %arg3[%c0_3, %c0_4], %2 {strides = array<i32>} : memref<8x128xf32, #tpu.memory_space<vmem>>, vector<8x128xf32>,
    return
  }
  func.func @transform_0(%arg0: i32) -> (i32, i32) {
    %c0_i32 = arith.constant 0 : i32
    %c0_i32_0 = arith.constant 0 : i32
    return %arg0, %c0_i32 : i32, i32
  }
  func.func @transform_1(%arg0: i32) -> (i32, i32) {
    %c0_i32 = arith.constant 0 : i32
    %c0_i32_0 = arith.constant 0 : i32
    %c0_i32_1 = arith.constant 0 : i32
    return %c0_i32, %c0_i32_0 : i32, i32
  }
  func.func @transform_2(%arg0: i32) -> (i32, i32) {
    %c0_i32 = arith.constant 0 : i32
    %c0_i32_0 = arith.constant 0 : i32
    return %arg0, %c0_i32 : i32, i32
  }
}

</mosaic_0001>

<llo_original>
// kernel: state_time_embedding.1
$region0: #{state_time_embedding.1}
  #allocation0 [shape = 'u32[]', space=smem, size = 0x4, offset = 0x4, fixed_abs, tag = 'smem constant byte address 0x4 - core index']
  #allocation1 [shape = 'u32[144,128]{1,0:T(1,128)}', space=vmem, size = 0x12000, scoped, tag = 'internal scratch']
  %s0 = inlined_call_operand.vmem [shape: f32[16,22], index: 0, kind: input, shape index: {}]
  %s1 = inlined_call_operand.vmem [shape: f32[22,128], index: 1, kind: input, shape index: {}]
  %s2 = inlined_call_operand.hbm [shape: f32[16,128], index: 2, kind: output, shape index: {}]
  %s3 = sld [smem:[#allocation0]]
  $region41: #{state_time_embedding.1} parent=0
    _
  %s5 = ssub.s32 1, %s3
  %s6 = scalar_select 0, %s5, %s3
  $region1: #{state_time_embedding.1} parent=0
    #allocation2 [shape = 'u8[8192]{0}', space=vmem, size = 0x2000, scoped, tag = 'output window, operand 0']
    #allocation3 [shape = 's32[2]{0}', space=sflag, size = 0x8, scoped, tag = 'scoped memory for state_time_embedding.1']
    %7 = vsyncpa [#allocation3], 0
    %s8 = scalar_lea.sflag [#allocation3], 1
    %9 = vsyncpa %s8, 0
    loop: start=0, step=1, limit=4
    $region2: #{state_time_embedding.1} parent=1 // loop_pre_header
      _
    $region3: #{state_time_embedding.1} parent=1 // loop_header
      %s11 = sphi 0, %s15
      %p12 = scmp.ge.s32.totalorder %s11, 4
      %s21 = sphi 0, %s23
      %s24 = sphi 0, %s21
      %s25 = sphi 0, %s24
      %s41 = sphi 0, %s25
      %s45 = sphi 0, %s45
      %s47 = sphi 0, %s45
      %s48 = sphi 0, %s47
      %s62 = sphi 0, %s48
      %s68 = sphi 0, %s70
      %s71 = sphi 0, %s68
      %s72 = sphi 0, %s71
      %s88 = sphi 0, %s72
    $region4: #{state_time_embedding.1} parent=1 // loop_header_branch
      %14 = sbr.rel (%p12) target = $region8
    $region5: #{state_time_embedding.1} parent=1 // loop_body
      %s16 = ssub.s32 %s11, 1
      %s17 = ssub.s32 %s11, 2
      %s18 = sadd.s32 %s11, 1
      %s19 = ssub.s32 %s11, %s18
      %p20 = scmp.eq.s32.totalorder %s19, 0
      %s22 = sadd.s32 %s21, 1
      %s23 = scalar_select %p20, %s21, %s22
      %p26 = pneg %p20
      %p27 = scmp.eq.s32.totalorder %s11, 1
      %p28 = por %p26, %p27
      %p29 = scmp.ne.s32.totalorder %s21, %s24
      %p30 = scmp.eq.s32.totalorder %s11, 0
      %p31 = por %p29, %p30
      %p32 = scmp.ne.s32.totalorder %s21, %s24
      %p33 = scmp.eq.s32.totalorder %s16, 1
      %p34 = por %p32, %p33
      %p35 = scmp.ne.s32.totalorder %s24, %s25
      %p36 = scmp.eq.s32.totalorder %s16, 0
      %p37 = por %p35, %p36
      %p38 = scmp.ne.s32.totalorder %s24, %s25
      %p39 = scmp.eq.s32.totalorder %s17, 1
      %p40 = por %p38, %p39
      %p42 = scmp.ne.s32.totalorder %s25, %s41
      %p43 = scmp.eq.s32.totalorder %s17, 0
      %p44 = por %p42, %p43
      %s46 = sadd.s32 %s45, 1
      %p49 = scmp.eq.s32.totalorder %s11, 1
      %p50 = scmp.ne.s32.totalorder %s45, %s47
      %p51 = scmp.eq.s32.totalorder %s11, 0
      %p52 = por %p50, %p51
      %p53 = scmp.ne.s32.totalorder %s45, %s47
      %p54 = scmp.eq.s32.totalorder %s16, 1
      %p55 = por %p53, %p54
      %p56 = scmp.ne.s32.totalorder %s47, %s48
      %p57 = scmp.eq.s32.totalorder %s16, 0
      %p58 = por %p56, %p57
      %p59 = scmp.ne.s32.totalorder %s47, %s48
      %p60 = scmp.eq.s32.totalorder %s17, 1
      %p61 = por %p59, %p60
      %p63 = scmp.ne.s32.totalorder %s48, %s62
      %p64 = scmp.eq.s32.totalorder %s17, 0
      %p65 = por %p63, %p64
      %s66 = ssub.s32 %s11, %s18
      %p67 = scmp.eq.s32.totalorder %s66, 0
      %s69 = sadd.s32 %s68, 1
      %s70 = scalar_select %p67, %s68, %s69
      %p73 = pneg %p67
      %p74 = scmp.eq.s32.totalorder %s11, 1
      %p75 = por %p73, %p74
      %p76 = scmp.ne.s32.totalorder %s68, %s71
      %p77 = scmp.eq.s32.totalorder %s11, 0
      %p78 = por %p76, %p77
      %p79 = scmp.ne.s32.totalorder %s68, %s71
      %p80 = scmp.eq.s32.totalorder %s16, 1
      %p81 = por %p79, %p80
      %p82 = scmp.ne.s32.totalorder %s71, %s72
      %p83 = scmp.eq.s32.totalorder %s16, 0
      %p84 = por %p82, %p83
      %p85 = scmp.ne.s32.totalorder %s71, %s72
      %p86 = scmp.eq.s32.totalorder %s17, 1
      %p87 = por %p85, %p86
      %p89 = scmp.ne.s32.totalorder %s72, %s88
      %p90 = scmp.eq.s32.totalorder %s17, 0
      %p91 = por %p89, %p90
      %p92 = scmp.le.s32.totalorder 1, %s11
      %p93 = scmp.lt.s32.totalorder %s11, 3
      %p94 = pnand %p92, %p93
      %p95 = pneg %p94
      // Predicated region
      $region9: #{state_time_embedding.1} parent=5 // pred_check
        _
      $region10: #{state_time_embedding.1} parent=5 // pred_check_branch
        %97 = sbr.rel (%p94) target = $region12
      $region11: #{state_time_embedding.1} parent=5 // pred_region
        %s98 = ssub.s32 %s11, 1
        // Predicated region
        $region13: #{state_time_embedding.1} parent=11 // pred_check
          %p99 = pneg %p58
        $region14: #{state_time_embedding.1} parent=11 // pred_check_branch
          %101 = sbr.rel (%p99) target = $region16
        $region15: #{state_time_embedding.1} parent=11 // pred_region
          _
        $region16: #{state_time_embedding.1} parent=11 // pred_fallthru
          _
      $region12: #{state_time_embedding.1} parent=5 // pred_fallthru
        _
      %p102 = scmp.lt.s32.totalorder %s11, 2
      // Predicated region
      $region17: #{state_time_embedding.1} parent=5 // pred_check
        %p103 = pneg %p102
      $region18: #{state_time_embedding.1} parent=5 // pred_check_branch
        %105 = sbr.rel (%p103) target = $region20
      $region19: #{state_time_embedding.1} parent=5 // pred_region
        // Predicated region
        $region21: #{state_time_embedding.1} parent=19 // pred_check
          %p106 = pneg %p31
        $region22: #{state_time_embedding.1} parent=19 // pred_check_branch
          %108 = sbr.rel (%p106) target = $region24
        $region23: #{state_time_embedding.1} parent=19 // pred_region
          %p109 = scmp.lt.s32.totalorder %s11, 1
          %s110 = scalar_select %p109, %s11, 1
          %s111 = smul.addr %s110, 8
          %s112 = scalar_lea.vmem %s0, %s111
        $region24: #{state_time_embedding.1} parent=19 // pred_fallthru
          _
      $region20: #{state_time_embedding.1} parent=5 // pred_fallthru
        _
      %p113 = scmp.le.s32.totalorder 1, %s11
      %p114 = scmp.lt.s32.totalorder %s11, 3
      %p115 = pnand %p113, %p114
      %p116 = pneg %p115
      // Predicated region
      $region25: #{state_time_embedding.1} parent=5 // pred_check
        _
      $region26: #{state_time_embedding.1} parent=5 // pred_check_branch
        %118 = sbr.rel (%p115) target = $region28
      $region27: #{state_time_embedding.1} parent=5 // pred_region
        %s119 = ssub.s32 %s11, 1
        %p120 = scmp.lt.s32.totalorder %s16, 1
        %s121 = scalar_select %p120, %s16, 1
        %s122 = smul.addr %s121, 8
        %s123 = scalar_lea.vmem %s0, %s122
        %p124 = pneg %p37
        %p125 = pneg %p34
        %p126 = pneg %p58
        %p127 = pneg %p55
        %p128 = pneg %p84
        %p129 = pneg %p81
        %s130 = sand.u32 %s71, 1
        %s131 = scalar_lea.sflag [#allocation3], %s130
        %s132 = sand.u32 %s71, 1
        %s133 = smul.addr %s132, 8
        %s134 = scalar_lea.vmem [#allocation2], %s133
        %p135 = scmp.lt.s32.totalorder %s16, 1
        %s136 = scalar_select %p135, %s16, 1
        %s137 = smul.addr %s136, 8
        %s138 = scalar_lea.vmem %s0, %s137
        %v139 = vld [vmem:[%s138] sm:$0xff]
        %v140 = vld [vmem:[%s1] sm:$0xff]
        %v141 = vld [vmem:[%s1 + $0x8] sm:$0xff]
        %v142 = vld [vmem:[%s1 + $0x10] sm:$0x3f]
        %vm143 = vcmask 179200
        %v145 = vsel %vm143, %v139, 0
        %vm147 = vcmask 1045504
        %v149 = vsel %vm147, %v142, 0
        %151 = vmatprep.subr.mxu0 0.0
        %152 = vmatpush1.msra.mxu0 0.0
        %153 = vmatprep.subr.mxu0 0.0
        %154 = vmatpush1.msra.mxu0 0.0
        %155 = vmatprep.subr.mxu0 0.0
        %156 = vmatpush1.msra.mxu0 0.0
        %157 = vmatprep.subr.mxu0 0.0
        %158 = vmatpush1.msra.mxu0 0.0
        %159 = vmatprep.subr.mxu0 0.0
        %160 = vmatpush1.msra.mxu0 0.0
        %161 = vmatprep.subr.mxu0 0.0
        %162 = vmatpush1.msra.mxu0 0.0
        %163 = vmatprep.subr.mxu0 0.0
        %164 = vmatpush1.msra.mxu0 0.0
        %165 = vmatprep.subr.mxu0 0.0
        %166 = vmatpush1.msra.mxu0 0.0
        %167 = vmatprep.subr.mxu0 0.0
        %168 = vmatpush1.msra.mxu0 0.0
        %169 = vmatprep.subr.mxu0 0.0
        %170 = vmatpush1.msra.mxu0 0.0
        %171 = vmatprep.subr.mxu0 0.0
        %172 = vmatpush1.msra.mxu0 0.0
        %173 = vmatprep.subr.mxu0 0.0
        %174 = vmatpush1.msra.mxu0 0.0
        %175 = vmatprep.subr.mxu0 0.0
        %176 = vmatpush1.msra.mxu0 0.0
        %177 = vmatprep.subr.mxu0 0.0
        %178 = vmatpush1.msra.mxu0 %v149
        %179 = vmatprep.subr.mxu0 0.0
        %180 = vmatpush1.msra.mxu0 %v141
        %181 = vmatprep.subr.mxu0 0.0
        %182 = vmatpush1.msra.mxu0 %v140
        %183 = vmatprep.subr.mxu0 0.0
        %184 = vmatpush2.msra.mxu0 0.0
        %185 = vmatprep.subr.mxu0 0.0
        %186 = vmatpush2.msra.mxu0 0.0
        %187 = vmatprep.subr.mxu0 0.0
        %188 = vmatpush2.msra.mxu0 0.0
        %189 = vmatprep.subr.mxu0 0.0
        %190 = vmatpush2.msra.mxu0 0.0
        %191 = vmatprep.subr.mxu0 0.0
        %192 = vmatpush2.msra.mxu0 0.0
        %193 = vmatprep.subr.mxu0 0.0
        %194 = vmatpush2.msra.mxu0 0.0
        %195 = vmatprep.subr.mxu0 0.0
        %196 = vmatpush2.msra.mxu0 0.0
        %197 = vmatprep.subr.mxu0 0.0
        %198 = vmatpush2.msra.mxu0 0.0
        %199 = vmatprep.subr.mxu0 0.0
        %200 = vmatpush2.msra.mxu0 0.0
        %201 = vmatprep.subr.mxu0 0.0
        %202 = vmatpush2.msra.mxu0 0.0
        %203 = vmatprep.subr.mxu0 0.0
        %204 = vmatpush2.msra.mxu0 0.0
        %205 = vmatprep.subr.mxu0 0.0
        %206 = vmatpush2.msra.mxu0 0.0
        %207 = vmatprep.subr.mxu0 0.0
        %208 = vmatpush2.msra.mxu0 0.0
        %209 = vmatprep.subr.mxu0 0.0
        %210 = vmatpush2.msra.mxu0 0.0
        %211 = vmatprep.subr.mxu0 0.0
        %212 = vmatpush2.msra.mxu0 0.0
        %213 = vmatprep.subr.mxu0 0.0
        %214 = vmatpush2.msra.mxu0 0.0
        %215 = vmatprep.mubr.f32.mxu0 0.0
        %216 = vmatmul.mubr.f32.gmra.mxu0 %v145
        %v217 = vpop.f32.mrf.mxu0
        %v218 = vadd.f32 0.0, %v217
        %v219 = vpop.f32.mrf.mxu0
        %220 = vdwg.mxu0
        %221 = vst [vmem:[%s134] sm:$0xff] %v218
        %s222 = sand.u32 %s71, 1
        %s223 = scalar_lea.sflag [#allocation3], %s222
        %s224 = sand.u32 %s71, 1
        %s225 = smul.addr %s224, 8
        %s226 = scalar_lea.vmem [#allocation2], %s225
        // Predicated region
        $region29: #{state_time_embedding.1} parent=27 // pred_check
          %p227 = pneg %p81
        $region30: #{state_time_embedding.1} parent=27 // pred_check_branch
          %229 = sbr.rel (%p227) target = $region32
        $region31: #{state_time_embedding.1} parent=27 // pred_region
          %s231 = ssub.s32 128, 128
          %232 = vsyncadd %s223, %s231
          %s233 = smul.addr %s16, 128
          %s234 = scalar_lea.hbm %s2, %s233
          %s236 = sshll.u32 %s226, 4
          %s237 = int_to_ptr.vmem [resolvable:$true] %s236
          %239 = dma.vmem_to_hbm [thread:$0]  %s237, 128, %s234, %s223
        $region32: #{state_time_embedding.1} parent=27 // pred_fallthru
          _
      $region28: #{state_time_embedding.1} parent=5 // pred_fallthru
        _
      %p240 = scmp.le.s32.totalorder 2, %s11
      // Predicated region
      $region33: #{state_time_embedding.1} parent=5 // pred_check
        %p241 = pneg %p240
      $region34: #{state_time_embedding.1} parent=5 // pred_check_branch
        %243 = sbr.rel (%p241) target = $region36
      $region35: #{state_time_embedding.1} parent=5 // pred_region
        %s244 = ssub.s32 %s11, 2
        // Predicated region
        $region37: #{state_time_embedding.1} parent=35 // pred_check
          %p245 = pneg %p87
        $region38: #{state_time_embedding.1} parent=35 // pred_check_branch
          %247 = sbr.rel (%p245) target = $region40
        $region39: #{state_time_embedding.1} parent=35 // pred_region
          %s248 = sand.u32 %s72, 1
          %s249 = scalar_lea.sflag [#allocation3], %s248
          %s250 = sand.u32 %s72, 1
          %s251 = smul.addr %s250, 8
          %s252 = scalar_lea.vmem [#allocation2], %s251
          %253 = dma.done %s249, 128
        $region40: #{state_time_embedding.1} parent=35 // pred_fallthru
          _
      $region36: #{state_time_embedding.1} parent=5 // pred_fallthru
        _
    $region6: #{state_time_embedding.1} parent=1 // loop_footer
      %s15 = sadd.s32 1, %s11
    $region7: #{state_time_embedding.1} parent=1 // loop_footer_branch
      %10 = sbr.rel target = $region3
    $region8: #{state_time_embedding.1} parent=1 // loop_exit
      _
    %254 = vsyncpa [#allocation3], 1
    %s255 = scalar_lea.sflag [#allocation3], 1
    %256 = vsyncpa %s255, 1

</llo_original>
